<compile_context>
chip_gen: v7x
topology: tpu7x:2x2x1
jax: 0.10.0
libtpu: 0.0.40
codegen_flags: <defaults>
</compile_context>

<pallas_src>
import jax
import jax.numpy as jnp
import numpy as np
from jax.experimental import pallas as pl
from jax.experimental.pallas import tpu as pltpu

_LN_EPS = 1e-5
_SQRT_HALF = 0.7071067811865476
_X_BUFS = 3          # pipeline depth for the dominant (streamed) x input


def _erf_approx(x):
    """Abramowitz & Stegun 7.1.26 polynomial erf, |err| <= 1.5e-7.

    Uses only exp + FMAs (guaranteed Mosaic lowerings) while matching
    PyTorch's exact (erf-based) F.gelu to ~1e-7.
    """
    a1, a2, a3, a4, a5 = (0.254829592, -0.284496736, 1.421413741,
                          -1.453152027, 1.061405429)
    p = 0.3275911
    sign = jnp.where(x >= 0.0, 1.0, -1.0)
    ax = jnp.abs(x)
    t = 1.0 / (1.0 + p * ax)
    poly = ((((a5 * t + a4) * t + a3) * t + a2) * t + a1) * t
    return sign * (1.0 - poly * jnp.exp(-ax * ax))


def _gelu_exact(x):
    # Matches PyTorch F.gelu default (erf formulation), not the tanh approx.
    return 0.5 * x * (1.0 + _erf_approx(x * _SQRT_HALF))


def _video_pipeline_kernel(x_ref, denom_ref, w1_ref, w2_ref, gamma_ref,
                           beta_ref, out_ref, sum_acc):
    # x_ref: [tb, ts, H]   denom_ref: [tb, 1]
    # w1_ref: [H, D]       w2_ref: [D, D]     (pre-transposed: y = x @ W)
    # gamma/beta: [1, D]   out_ref: [tb, D]   sum_acc: [tb, H] f32 scratch
    s = pl.program_id(1)

    @pl.when(s == 0)
    def _init():
        sum_acc[...] = jnp.zeros_like(sum_acc)

    # PyTorch sums *all* sequence positions and divides by the mask count.
    sum_acc[...] += jnp.sum(x_ref[...].astype(jnp.float32), axis=1)

    @pl.when(s == pl.num_programs(1) - 1)
    def _finalize():
        # Rows whose mask sums to 0 produce inf/NaN, matching PyTorch.
        pooled = sum_acc[...] / denom_ref[...]                        # [tb, H]
        e1 = jnp.dot(pooled, w1_ref[...],
                     preferred_element_type=jnp.float32)              # [tb, D]
        e2 = jnp.dot(_gelu_exact(e1), w2_ref[...],
                     preferred_element_type=jnp.float32)              # [tb, D]
        z = e1 + e2
        mu = jnp.mean(z, axis=-1, keepdims=True)
        c = z - mu
        var = jnp.mean(c * c, axis=-1, keepdims=True)
        normed = c * jax.lax.rsqrt(var + _LN_EPS)
        out_ref[...] = (normed * gamma_ref[...] + beta_ref[...]).astype(out_ref.dtype)


def _legal_tiles(n):
    """Block sizes for a sublane-constrained dim: multiples of 8 dividing n,
    plus n itself (full extent is always legal)."""
    tiles = [d for d in range(8, n + 1, 8) if n % d == 0]
    if n not in tiles:
        tiles.append(n)
    return sorted(tiles)


def _select_tiles(B, S, H, D, x_itemsize):
    """VMEM-budget-aware (tb, ts) selection + explicit vmem limit."""
    try:
        vmem_phys = int(pltpu.get_tpu_info().vmem_capacity_bytes)
    except Exception:
        vmem_phys = 64 << 20                      # v7x-conservative fallback
    vmem_limit = max(min(vmem_phys // 2, 96 << 20), 16 << 20)
    budget = int(vmem_limit * 0.70)               # headroom for Mosaic scratch

    b_tiles = _legal_tiles(B)
    s_tiles = _legal_tiles(S)

    tb_cap = 256                                  # amortizes ~0.35us/step overhead
    if B >= 16:
        tb_cap = min(tb_cap, B // 2)              # >=2 tiles -> v7x megacore split

    def step_bytes(tb, ts):
        fixed = (2 * (H * D + D * D + 2 * D) * 4  # w1/w2/gamma/beta (2 buffers)
                 + 2 * tb * D * 4                 # output tile (2 buffers)
                 + 2 * tb * 4                     # denom tile  (2 buffers)
                 + tb * H * 4)                    # pooled-sum accumulator
        return fixed + _X_BUFS * tb * ts * H * x_itemsize

    tb = max([t for t in b_tiles if t <= tb_cap] or [b_tiles[0]])
    while tb != b_tiles[0] and step_bytes(tb, s_tiles[0]) > budget:
        tb = max([t for t in b_tiles if t < tb] or [b_tiles[0]])
    ts = max([t for t in s_tiles if step_bytes(tb, t) <= budget] or [s_tiles[0]])
    return tb, ts, vmem_limit


def _maybe_buffered_spec(block_shape, index_map, buffers):
    if buffers > 2:
        try:
            return pl.BlockSpec(block_shape, index_map,
                                pipeline_mode=pl.Buffered(buffers))
        except Exception:
            pass  # older JAX without pipeline_mode/Buffered -> default depth 2
    return pl.BlockSpec(block_shape, index_map)


def video_pipeline_forward(input_ids, attention_mask, w1, w2, gamma, beta):
    """Fused Pallas forward.

    input_ids: [B,S,H] (f32 or bf16 - bf16 halves the dominant HBM stream),
    attention_mask: [B,S].  Weights pre-transposed: w1 [H,D], w2 [D,D].
    """
    B, S, H = input_ids.shape
    D = w1.shape[1]

    tb, ts, vmem_limit = _select_tiles(B, S, H, D, input_ids.dtype.itemsize)
    grid = (B // tb, S // ts)

    # Tiny wrapper-side reduction (1/H of the x bytes) -> removes a second DMA
    # stream and an in-kernel cross-lane reduce.
    denom = jnp.sum(attention_mask.astype(jnp.float32), axis=1, keepdims=True)
    gamma2 = gamma.reshape(1, D).astype(jnp.float32)
    beta2 = beta.reshape(1, D).astype(jnp.float32)

    n_steps = grid[0] * grid[1]
    x_spec = _maybe_buffered_spec((tb, ts, H), lambda i, s: (i, s, 0),
                                  buffers=_X_BUFS if n_steps >= _X_BUFS else 2)

    return pl.pallas_call(
        _video_pipeline_kernel,
        out_shape=jax.ShapeDtypeStruct((B, D), jnp.float32),
        grid_spec=pltpu.PrefetchScalarGridSpec(
            num_scalar_prefetch=0,
            grid=grid,
            in_specs=[
                x_spec,                                          # streamed x
                pl.BlockSpec((tb, 1), lambda i, s: (i, 0)),      # mask counts
                pl.BlockSpec((H, D), lambda i, s: (0, 0)),       # W1 (resident)
                pl.BlockSpec((D, D), lambda i, s: (0, 0)),       # W2 (resident)
                pl.BlockSpec((1, D), lambda i, s: (0, 0)),       # LN gamma
                pl.BlockSpec((1, D), lambda i, s: (0, 0)),       # LN beta
            ],
            # Lane-dense output block: D = 512 = 4 * 128 -> unmasked stores.
            out_specs=pl.BlockSpec((tb, D), lambda i, s: (i, 0)),
            scratch_shapes=[pltpu.VMEM((tb, H), jnp.float32)],   # pooled-sum acc
        ),
        compiler_params=pltpu.CompilerParams(
            dimension_semantics=("parallel", "arbitrary"),
            vmem_limit_bytes=int(vmem_limit),
        ),
    )(input_ids, denom, w1, w2, gamma2, beta2)


class VideoPipline:
    """JAX/Pallas counterpart of the PyTorch VideoPipline module (eval mode)."""

    # TODO(synk): nn.Dropout (p=0.1 on the input, p=0.5 inside Projection) is a
    # no-op here, matching eval()/inference semantics; training-mode stochastic
    # dropout is not implemented.

    def __init__(self, hidden_num: int, d_out: int = 512, dropout: float = 0.1,
                 *, key: jax.Array):
        k1, k2 = jax.random.split(key)
        # nn.Linear stores weight as [out, in]; keep them pre-transposed
        # ([in, out]) so the kernel computes y = x @ W directly (lane-dense N).
        self.w1 = (jax.random.normal(k1, (hidden_num, d_out), jnp.float32)
                   / np.sqrt(hidden_num)).astype(jnp.float32)
        self.w2 = (jax.random.normal(k2, (d_out, d_out), jnp.float32)
                   / np.sqrt(d_out)).astype(jnp.float32)
        self.gamma = jnp.ones((d_out,), jnp.float32)   # LayerNorm weight
        self.beta = jnp.zeros((d_out,), jnp.float32)   # LayerNorm bias
        self.dropout = dropout

    def __call__(self, input_ids: jax.Array,
                 attention_mask: jax.Array) -> jax.Array:
        return video_pipeline_forward(input_ids, attention_mask,
                                      self.w1, self.w2, self.gamma, self.beta)


def _reference_forward(x, mask, w1, w2, gamma, beta):
    """Plain-JAX reference (exact erf GELU, f32-accurate matmuls)."""
    pooled = x.astype(jnp.float32).sum(axis=1) / mask.sum(axis=1, keepdims=True)
    e1 = jnp.dot(pooled, w1, precision=jax.lax.Precision.HIGHEST)
    e2 = jnp.dot(jax.nn.gelu(e1, approximate=False), w2,
                 precision=jax.lax.Precision.HIGHEST)
    z = e1 + e2
    mu = z.mean(axis=-1, keepdims=True)
    var = ((z - mu) ** 2).mean(axis=-1, keepdims=True)
    return (z - mu) / jnp.sqrt(var + _LN_EPS) * gamma + beta


if __name__ == "__main__":
    B, S, H = 2, 8, 32          # batch, seq, hidden_num
    key = jax.random.PRNGKey(0)
    k_model, k_x = jax.random.split(key)

    model = VideoPipline(hidden_num=H, key=k_model)

    x = jax.random.normal(k_x, (B, S, H), dtype=jnp.float32)
    attention_mask = jnp.ones((B, S), dtype=jnp.float32).at[1, 5:].set(0.0)

    # f32 path
    out = jax.block_until_ready(model(x, attention_mask))
    assert out.shape == (B, 512), out.shape
    ref = _reference_forward(x, attention_mask, model.w1, model.w2,
                             model.gamma, model.beta)
    ref = jax.block_until_ready(ref)
    # Tolerance covers MXU pass-precision differences on f32 matmuls plus the
    # ~1e-7 polynomial-erf error; structural bugs would be O(1) off.
    np.testing.assert_allclose(np.asarray(out), np.asarray(ref),
                               rtol=2e-2, atol=2e-2)

    # bf16-streaming path (halves HBM traffic on the dominant x stream; all
    # accumulation / post-pooling math stays f32 inside the kernel).
    x_bf16 = x.astype(jnp.bfloat16)
    out_bf16 = jax.block_until_ready(model(x_bf16, attention_mask))
    ref_bf16 = _reference_forward(x_bf16, attention_mask, model.w1, model.w2,
                                  model.gamma, model.beta)
    np.testing.assert_allclose(np.asarray(out_bf16), np.asarray(ref_bf16),
                               rtol=2e-2, atol=2e-2)

    print("KERNEL_OK")
</pallas_src>

<mosaic_0001>
module attributes {stable_mosaic.version = 11 : i64} {
  func.func @_video_pipeline_kernel(%arg0: i32, %arg1: i32, %arg2: memref<2x8x32xf32, #tpu.memory_space<vmem>>, %arg3: memref<2x1xf32, #tpu.memory_space<vmem>>, %arg4: memref<32x512xf32, #tpu.memory_space<vmem>>, %arg5: memref<512x512xf32, #tpu.memory_space<vmem>>, %arg6: memref<1x512xf32, #tpu.memory_space<vmem>>, %arg7: memref<1x512xf32, #tpu.memory_space<vmem>>, %arg8: memref<2x512xf32, #tpu.memory_space<vmem>>, %arg9: memref<2x32xf32, #tpu.memory_space<vmem>>) attributes {dimension_semantics = [#tpu.dimension_semantics<parallel>, #tpu.dimension_semantics<arbitrary>], iteration_bounds = array<i64: 1, 1>, scalar_prefetch = 0 : i64, scratch_operands = 1 : i64, tpu.core_type = #tpu.core_type<tc>, window_params = [{transform_indices = @transform_0, window_bounds = array<i64: 2, 8, 32>}, {transform_indices = @transform_1, window_bounds = array<i64: 2, 1>}, {pipeline_mode = #tpu.pipeline_mode<synchronous>, transform_indices = @transform_2, window_bounds = array<i64: 32, 512>}, {pipeline_mode = #tpu.pipeline_mode<synchronous>, transform_indices = @transform_3, window_bounds = array<i64: 512, 512>}, {pipeline_mode = #tpu.pipeline_mode<synchronous>, transform_indices = @transform_4, window_bounds = array<i64: 1, 512>}, {pipeline_mode = #tpu.pipeline_mode<synchronous>, transform_indices = @transform_5, window_bounds = array<i64: 1, 512>}, {transform_indices = @transform_6, window_bounds = array<i64: 2, 512>}]} {
    %c0_i32 = arith.constant 0 : i32
    %0 = arith.cmpi eq, %arg1, %c0_i32 : i32
    %1 = arith.extui %0 : i1 to i32
    %c0_i32_0 = arith.constant 0 : i32
    %2 = arith.cmpi ne, %1, %c0_i32_0 : i32
    scf.if %2 {
      %cst_9 = arith.constant 0.000000e+00 : f32
      %11 = vector.broadcast %cst_9 : f32 to vector<2x32xf32>
      %c0_10 = arith.constant 0 : index
      %c0_11 = arith.constant 0 : index
      %12 = vector.load %arg9[%c0_10, %c0_11] : memref<2x32xf32, #tpu.memory_space<vmem>>, vector<2x32xf32>
      tpu.vector_store %arg9[%c0_10, %c0_11], %11 {strides = array<i32>} : memref<2x32xf32, #tpu.memory_space<vmem>>, vector<2x32xf32>,
    } else {
    }
    %c0 = arith.constant 0 : index
    %c0_1 = arith.constant 0 : index
    %3 = vector.load %arg9[%c0, %c0_1] : memref<2x32xf32, #tpu.memory_space<vmem>>, vector<2x32xf32>
    %c0_2 = arith.constant 0 : index
    %c0_3 = arith.constant 0 : index
    %c0_4 = arith.constant 0 : index
    %4 = vector.load %arg2[%c0_2, %c0_3, %c0_4] : memref<2x8x32xf32, #tpu.memory_space<vmem>>, vector<2x8x32xf32>
    %cst = arith.constant dense<0.000000e+00> : vector<2x32xf32>
    %5 = vector.multi_reduction <add>, %4, %cst [1] : vector<2x8x32xf32> to vector<2x32xf32>
    %6 = arith.addf %3, %5 : vector<2x32xf32>
    %c0_5 = arith.constant 0 : index
    %c0_6 = arith.constant 0 : index
    %7 = vector.load %arg9[%c0_5, %c0_6] : memref<2x32xf32, #tpu.memory_space<vmem>>, vector<2x32xf32>
    tpu.vector_store %arg9[%c0_5, %c0_6], %6 {strides = array<i32>} : memref<2x32xf32, #tpu.memory_space<vmem>>, vector<2x32xf32>,
    %c0_i32_7 = arith.constant 0 : i32
    %8 = arith.cmpi eq, %arg1, %c0_i32_7 : i32
    %9 = arith.extui %8 : i1 to i32
    %c0_i32_8 = arith.constant 0 : i32
    %10 = arith.cmpi ne, %9, %c0_i32_8 : i32
    scf.if %10 {
      %c0_9 = arith.constant 0 : index
      %c0_10 = arith.constant 0 : index
      %11 = vector.load %arg9[%c0_9, %c0_10] : memref<2x32xf32, #tpu.memory_space<vmem>>, vector<2x32xf32>
      %c0_11 = arith.constant 0 : index
      %c0_12 = arith.constant 0 : index
      %12 = vector.load %arg3[%c0_11, %c0_12] : memref<2x1xf32, #tpu.memory_space<vmem>>, vector<2x1xf32>
      %13 = vector.broadcast %12 : vector<2x1xf32> to vector<2x32xf32>
      %14 = arith.divf %11, %13 : vector<2x32xf32>
      %c0_13 = arith.constant 0 : index
      %c0_14 = arith.constant 0 : index
      %15 = vector.load %arg4[%c0_13, %c0_14] : memref<32x512xf32, #tpu.memory_space<vmem>>, vector<32x512xf32>
      %cst_15 = arith.constant dense<0.000000e+00> : vector<2x512xf32>
      %16 = tpu.matmul %14, %15, %cst_15 {dimension_numbers = #tpu.dot_dimension_numbers<[1], [0], [0], [1], [0, 0, 1, 1], [], []>} : vector<2x32xf32>, vector<32x512xf32>, vector<2x512xf32> -> vector<2x512xf32>
      %cst_16 = arith.constant 5.000000e-01 : f32
      %17 = vector.broadcast %cst_16 : f32 to vector<2x512xf32>
      %18 = arith.mulf %17, %16 : vector<2x512xf32>
      %cst_17 = arith.constant 0.707106769 : f32
      %19 = vector.broadcast %cst_17 : f32 to vector<2x512xf32>
      %20 = arith.mulf %16, %19 : vector<2x512xf32>
      %cst_18 = arith.constant 0.000000e+00 : f32
      %21 = vector.broadcast %cst_18 : f32 to vector<2x512xf32>
      %22 = arith.cmpf oge, %20, %21 : vector<2x512xf32>
      %cst_19 = arith.constant 1.000000e+00 : f32
      %cst_20 = arith.constant -1.000000e+00 : f32
      %23 = vector.broadcast %cst_19 : f32 to vector<2x512xf32>
      %24 = vector.broadcast %cst_20 : f32 to vector<2x512xf32>
      %25 = arith.select %22, %23, %24 : vector<2x512xi1>, vector<2x512xf32>
      %26 = math.absf %20 : vector<2x512xf32>
      %cst_21 = arith.constant 0.327591091 : f32
      %27 = vector.broadcast %cst_21 : f32 to vector<2x512xf32>
      %28 = arith.mulf %27, %26 : vector<2x512xf32>
      %cst_22 = arith.constant 1.000000e+00 : f32
      %29 = vector.broadcast %cst_22 : f32 to vector<2x512xf32>
      %30 = arith.addf %29, %28 : vector<2x512xf32>
      %cst_23 = arith.constant 1.000000e+00 : f32
      %31 = vector.broadcast %cst_23 : f32 to vector<2x512xf32>
      %32 = arith.divf %31, %30 : vector<2x512xf32>
      %cst_24 = arith.constant 1.06140542 : f32
      %33 = vector.broadcast %cst_24 : f32 to vector<2x512xf32>
      %34 = arith.mulf %33, %32 : vector<2x512xf32>
      %cst_25 = arith.constant -1.45315206 : f32
      %35 = vector.broadcast %cst_25 : f32 to vector<2x512xf32>
      %36 = arith.addf %34, %35 : vector<2x512xf32>
      %37 = arith.mulf %36, %32 : vector<2x512xf32>
      %cst_26 = arith.constant 1.42141378 : f32
      %38 = vector.broadcast %cst_26 : f32 to vector<2x512xf32>
      %39 = arith.addf %37, %38 : vector<2x512xf32>
      %40 = arith.mulf %39, %32 : vector<2x512xf32>
      %cst_27 = arith.constant -0.284496725 : f32
      %41 = vector.broadcast %cst_27 : f32 to vector<2x512xf32>
      %42 = arith.addf %40, %41 : vector<2x512xf32>
      %43 = arith.mulf %42, %32 : vector<2x512xf32>
      %cst_28 = arith.constant 0.254829586 : f32
      %44 = vector.broadcast %cst_28 : f32 to vector<2x512xf32>
      %45 = arith.addf %43, %44 : vector<2x512xf32>
      %46 = arith.mulf %45, %32 : vector<2x512xf32>
      %cst_29 = arith.constant 0.000000e+00 : f32
      %47 = vector.broadcast %cst_29 : f32 to vector<2x512xf32>
      %48 = arith.subf %47, %26 : vector<2x512xf32>
      %49 = arith.mulf %48, %26 : vector<2x512xf32>
      %50 = math.exp %49 : vector<2x512xf32>
      %51 = arith.mulf %46, %50 : vector<2x512xf32>
      %cst_30 = arith.constant 1.000000e+00 : f32
      %52 = vector.broadcast %cst_30 : f32 to vector<2x512xf32>
      %53 = arith.subf %52, %51 : vector<2x512xf32>
      %54 = arith.mulf %25, %53 : vector<2x512xf32>
      %cst_31 = arith.constant 1.000000e+00 : f32
      %55 = vector.broadcast %cst_31 : f32 to vector<2x512xf32>
      %56 = arith.addf %55, %54 : vector<2x512xf32>
      %57 = arith.mulf %18, %56 : vector<2x512xf32>
      %c0_32 = arith.constant 0 : index
      %c0_33 = arith.constant 0 : index
      %58 = vector.load %arg5[%c0_32, %c0_33] : memref<512x512xf32, #tpu.memory_space<vmem>>, vector<512x512xf32>
      %cst_34 = arith.constant dense<0.000000e+00> : vector<2x512xf32>
      %59 = tpu.matmul %57, %58, %cst_34 {dimension_numbers = #tpu.dot_dimension_numbers<[1], [0], [0], [1], [0, 0, 1, 1], [], []>} : vector<2x512xf32>, vector<512x512xf32>, vector<2x512xf32> -> vector<2x512xf32>
      %60 = arith.addf %16, %59 : vector<2x512xf32>
      %cst_35 = arith.constant dense<0.000000e+00> : vector<2xf32>
      %61 = vector.multi_reduction <add>, %60, %cst_35 [1] : vector<2x512xf32> to vector<2xf32>
      %62 = vector.shape_cast %61 : vector<2xf32> to vector<2x1xf32>
      %cst_36 = arith.constant 5.120000e+02 : f32
      %63 = vector.broadcast %cst_36 : f32 to vector<2x1xf32>
      %64 = arith.divf %62, %63 : vector<2x1xf32>
      %65 = vector.broadcast %64 : vector<2x1xf32> to vector<2x512xf32>
      %66 = arith.subf %60, %65 : vector<2x512xf32>
      %67 = arith.mulf %66, %66 : vector<2x512xf32>
      %cst_37 = arith.constant dense<0.000000e+00> : vector<2xf32>
      %68 = vector.multi_reduction <add>, %67, %cst_37 [1] : vector<2x512xf32> to vector<2xf32>
      %69 = vector.shape_cast %68 : vector<2xf32> to vector<2x1xf32>
      %cst_38 = arith.constant 5.120000e+02 : f32
      %70 = vector.broadcast %cst_38 : f32 to vector<2x1xf32>
      %71 = arith.divf %69, %70 : vector<2x1xf32>
      %cst_39 = arith.constant 9.99999974E-6 : f32
      %72 = vector.broadcast %cst_39 : f32 to vector<2x1xf32>
      %73 = arith.addf %71, %72 : vector<2x1xf32>
      %74 = math.rsqrt %73 : vector<2x1xf32>
      %75 = vector.broadcast %74 : vector<2x1xf32> to vector<2x512xf32>
      %76 = arith.mulf %66, %75 : vector<2x512xf32>
      %c0_40 = arith.constant 0 : index
      %c0_41 = arith.constant 0 : index
      %77 = vector.load %arg6[%c0_40, %c0_41] : memref<1x512xf32, #tpu.memory_space<vmem>>, vector<1x512xf32>
      %78 = vector.broadcast %77 : vector<1x512xf32> to vector<2x512xf32>
      %79 = arith.mulf %76, %78 : vector<2x512xf32>
      %c0_42 = arith.constant 0 : index
      %c0_43 = arith.constant 0 : index
      %80 = vector.load %arg7[%c0_42, %c0_43] : memref<1x512xf32, #tpu.memory_space<vmem>>, vector<1x512xf32>
      %81 = vector.broadcast %80 : vector<1x512xf32> to vector<2x512xf32>
      %82 = arith.addf %79, %81 : vector<2x512xf32>
      %c0_44 = arith.constant 0 : index
      %c0_45 = arith.constant 0 : index
      %83 = vector.load %arg8[%c0_44, %c0_45] : memref<2x512xf32, #tpu.memory_space<vmem>>, vector<2x512xf32>
      tpu.vector_store %arg8[%c0_44, %c0_45], %82 {strides = array<i32>} : memref<2x512xf32, #tpu.memory_space<vmem>>, vector<2x512xf32>,
    } else {
    }
    return
  }
  func.func @transform_0(%arg0: i32, %arg1: i32) -> (i32, i32, i32) {
    %c0_i32 = arith.constant 0 : i32
    %c0_i32_0 = arith.constant 0 : i32
    return %arg0, %arg1, %c0_i32 : i32, i32, i32
  }
  func.func @transform_1(%arg0: i32, %arg1: i32) -> (i32, i32) {
    %c0_i32 = arith.constant 0 : i32
    %c0_i32_0 = arith.constant 0 : i32
    return %arg0, %c0_i32 : i32, i32
  }
  func.func @transform_2(%arg0: i32, %arg1: i32) -> (i32, i32) {
    %c0_i32 = arith.constant 0 : i32
    %c0_i32_0 = arith.constant 0 : i32
    %c0_i32_1 = arith.constant 0 : i32
    return %c0_i32, %c0_i32_0 : i32, i32
  }
  func.func @transform_3(%arg0: i32, %arg1: i32) -> (i32, i32) {
    %c0_i32 = arith.constant 0 : i32
    %c0_i32_0 = arith.constant 0 : i32
    %c0_i32_1 = arith.constant 0 : i32
    return %c0_i32, %c0_i32_0 : i32, i32
  }
  func.func @transform_4(%arg0: i32, %arg1: i32) -> (i32, i32) {
    %c0_i32 = arith.constant 0 : i32
    %c0_i32_0 = arith.constant 0 : i32
    %c0_i32_1 = arith.constant 0 : i32
    return %c0_i32, %c0_i32_0 : i32, i32
  }
  func.func @transform_5(%arg0: i32, %arg1: i32) -> (i32, i32) {
    %c0_i32 = arith.constant 0 : i32
    %c0_i32_0 = arith.constant 0 : i32
    %c0_i32_1 = arith.constant 0 : i32
    return %c0_i32, %c0_i32_0 : i32, i32
  }
  func.func @transform_6(%arg0: i32, %arg1: i32) -> (i32, i32) {
    %c0_i32 = arith.constant 0 : i32
    %c0_i32_0 = arith.constant 0 : i32
    return %arg0, %c0_i32 : i32, i32
  }
}

</mosaic_0001>

<llo_original>
// kernel: tpu_custom_call.1
$region0: #{tpu_custom_call.1}
  #allocation0 [shape = 'u32[]', space=smem, size = 0x4, offset = 0x4, fixed_abs, tag = 'smem constant byte address 0x4 - core index']
  #allocation1 [shape = 'u32[144,128]{1,0:T(1,128)}', space=vmem, size = 0x12000, scoped, tag = 'internal scratch']
  #allocation2 [shape = 'f32[2,32]{1,0:T(2,128)}', space=vmem, size = 0x400, scoped, tag = 'scratch operand']
  %s0 = inlined_call_operand.hbm [shape: f32[2,8,32], index: 0, kind: input, shape index: {}]
  %s1 = inlined_call_operand.vmem [shape: f32[2,1], index: 1, kind: input, shape index: {}]
  %s2 = inlined_call_operand.hbm [shape: f32[32,512], index: 2, kind: input, shape index: {}]
  %s3 = inlined_call_operand.hbm [shape: f32[512,512], index: 3, kind: input, shape index: {}]
  %s4 = inlined_call_operand.vmem [shape: f32[1,512], index: 4, kind: input, shape index: {}]
  %s5 = inlined_call_operand.vmem [shape: f32[1,512], index: 5, kind: input, shape index: {}]
  %s6 = inlined_call_operand.hbm [shape: f32[2,512], index: 6, kind: output, shape index: {}]
  %s7 = sld [smem:[#allocation0]]
  $region54: #{tpu_custom_call.1} parent=0
    _
  %s9 = ssub.s32 1, %s7
  %s10 = scalar_select 0, %s9, %s7
  $region1: #{tpu_custom_call.1} parent=0
    #allocation3 [shape = 'u8[8192]{0}', space=vmem, size = 0x2000, scoped, tag = 'input window, operand 0, single buffered']
    #allocation4 [shape = 's32[1]{0}', space=sflag, size = 0x4, scoped, tag = 'scoped memory for tpu_custom_call.1']
    #allocation5 [shape = 's32[1]{0}', space=sflag, size = 0x4, scoped, tag = 'scoped memory for tpu_custom_call.1']
    #allocation6 [shape = 'u8[65536]{0}', space=vmem, size = 0x10000, scoped, tag = 'input window, operand 2, single buffered']
    #allocation7 [shape = 's32[1]{0}', space=sflag, size = 0x4, scoped, tag = 'scoped memory for tpu_custom_call.1']
    #allocation8 [shape = 'u8[1048576]{0}', space=vmem, size = 0x100000, scoped, tag = 'input window, operand 3, single buffered']
    #allocation9 [shape = 'u8[4096]{0}', space=vmem, size = 0x1000, scoped, tag = 'output window, operand 0, single buffered']
    %11 = vsyncpa [#allocation4], 0
    %12 = vsyncpa [#allocation7], 0
    %13 = vsyncpa [#allocation5], 0
    // Predicated region
    $region2: #{tpu_custom_call.1} parent=1 // pred_check
      _
    $region3: #{tpu_custom_call.1} parent=1 // pred_check_branch
      %15 = sbr.rel (0) target = $region5
    $region4: #{tpu_custom_call.1} parent=1 // pred_region
      %s17 = ssub.s32 256, 256
      %18 = vsyncadd [#allocation4], %s17
      %s19 = sshll.u32 [#allocation3], 4
      %s20 = int_to_ptr.vmem [resolvable:$true] %s19
      %25 = dma.hbm_to_vmem [thread:$0]  %s0, 256, %s20, [#allocation4], 128, 128, 8
    $region5: #{tpu_custom_call.1} parent=1 // pred_fallthru
      _
    // Predicated region
    $region6: #{tpu_custom_call.1} parent=1 // pred_check
      _
    $region7: #{tpu_custom_call.1} parent=1 // pred_check_branch
      %27 = sbr.rel (0) target = $region9
    $region8: #{tpu_custom_call.1} parent=1 // pred_region
      _
    $region9: #{tpu_custom_call.1} parent=1 // pred_fallthru
      _
    // Predicated region
    $region10: #{tpu_custom_call.1} parent=1 // pred_check
      _
    $region11: #{tpu_custom_call.1} parent=1 // pred_check_branch
      %29 = sbr.rel (0) target = $region13
    $region12: #{tpu_custom_call.1} parent=1 // pred_region
      %s31 = ssub.s32 2048, 2048
      %32 = vsyncadd [#allocation7], %s31
      %s33 = sshll.u32 [#allocation6], 4
      %s34 = int_to_ptr.vmem [resolvable:$true] %s33
      %39 = dma.hbm_to_vmem [thread:$0]  %s2, 2048, %s34, [#allocation7], 512, 512, 32
    $region13: #{tpu_custom_call.1} parent=1 // pred_fallthru
      _
    // Predicated region
    $region14: #{tpu_custom_call.1} parent=1 // pred_check
      _
    $region15: #{tpu_custom_call.1} parent=1 // pred_check_branch
      %41 = sbr.rel (0) target = $region17
    $region16: #{tpu_custom_call.1} parent=1 // pred_region
      %s43 = ssub.s32 32768, 32768
      %44 = vsyncadd [#allocation7], %s43
      %s45 = sshll.u32 [#allocation8], 4
      %s46 = int_to_ptr.vmem [resolvable:$true] %s45
      %51 = dma.hbm_to_vmem [thread:$0]  %s3, 32768, %s46, [#allocation7], 512, 512, 32
    $region17: #{tpu_custom_call.1} parent=1 // pred_fallthru
      _
    // Predicated region
    $region18: #{tpu_custom_call.1} parent=1 // pred_check
      _
    $region19: #{tpu_custom_call.1} parent=1 // pred_check_branch
      %53 = sbr.rel (0) target = $region21
    $region20: #{tpu_custom_call.1} parent=1 // pred_region
      _
    $region21: #{tpu_custom_call.1} parent=1 // pred_fallthru
      _
    // Predicated region
    $region22: #{tpu_custom_call.1} parent=1 // pred_check
      _
    $region23: #{tpu_custom_call.1} parent=1 // pred_check_branch
      %55 = sbr.rel (0) target = $region25
    $region24: #{tpu_custom_call.1} parent=1 // pred_region
      _
    $region25: #{tpu_custom_call.1} parent=1 // pred_fallthru
      _
    // Predicated region
    $region26: #{tpu_custom_call.1} parent=1 // pred_check
      _
    $region27: #{tpu_custom_call.1} parent=1 // pred_check_branch
      %57 = sbr.rel (0) target = $region29
    $region28: #{tpu_custom_call.1} parent=1 // pred_region
      %58 = dma.done [#allocation4], 256
    $region29: #{tpu_custom_call.1} parent=1 // pred_fallthru
      _
    // Predicated region
    $region30: #{tpu_custom_call.1} parent=1 // pred_check
      _
    $region31: #{tpu_custom_call.1} parent=1 // pred_check_branch
      %60 = sbr.rel (0) target = $region33
    $region32: #{tpu_custom_call.1} parent=1 // pred_region
      %61 = dma.done [#allocation7], 2048
    $region33: #{tpu_custom_call.1} parent=1 // pred_fallthru
      _
    // Predicated region
    $region34: #{tpu_custom_call.1} parent=1 // pred_check
      _
    $region35: #{tpu_custom_call.1} parent=1 // pred_check_branch
      %63 = sbr.rel (0) target = $region37
    $region36: #{tpu_custom_call.1} parent=1 // pred_region
      %64 = dma.done [#allocation7], 32768
    $region37: #{tpu_custom_call.1} parent=1 // pred_fallthru
      _
    %p65 = scmp.eq.s32.totalorder 0, 0
    // Predicated region
    $region38: #{tpu_custom_call.1} parent=1 // pred_check
      %p66 = pneg %p65
    $region39: #{tpu_custom_call.1} parent=1 // pred_check_branch
      %68 = sbr.rel (%p66) target = $region41
    $region40: #{tpu_custom_call.1} parent=1 // pred_region
      %vm69 = vcmask 254976
      %70 = vst.msk [vmem:[#allocation2] sm:$0x3] %vm69, 0.0
    $region41: #{tpu_custom_call.1} parent=1 // pred_fallthru
      _
    %v71 = vld [vmem:[#allocation2] sm:$0x3]
    %v72 = vld [vmem:[#allocation3] sm:$0xff]
    %v73 = vld [vmem:[#allocation3 + $0x8] sm:$0xff]
    %vm74 = vcmask 261120
    %v75 = vsel %vm74, %v72, 0.0
    %v76 = vrot.slane %v75, 4
    %v77 = vadd.f32 %v75, %v76
    %v78 = vrot.slane %v77, 2
    %v79 = vadd.f32 %v77, %v78
    %v80 = vrot.slane %v79, 1
    %v81 = vadd.f32 %v79, %v80
    %v82 = vsel %vm74, %v73, 0.0
    %v83 = vrot.slane %v82, 4
    %v84 = vadd.f32 %v82, %v83
    %v85 = vrot.slane %v84, 2
    %v86 = vadd.f32 %v84, %v85
    %v87 = vrot.slane %v86, 1
    %v88 = vadd.f32 %v86, %v87
    %vm91 = vcmask 1041409
    %v92 = vsel %vm91, %v88, %v81
    %v94 = vadd.f32 %v71, %v92
    %vm95 = vcmask 254976
    %96 = vst.msk [vmem:[#allocation2] sm:$0x3] %vm95, %v94
    // Predicated region
    $region42: #{tpu_custom_call.1} parent=1 // pred_check
      %p97 = pneg %p65
    $region43: #{tpu_custom_call.1} parent=1 // pred_check_branch
      %99 = sbr.rel (%p97) target = $region45
    $region44: #{tpu_custom_call.1} parent=1 // pred_region
      %v100 = vld [vmem:[#allocation2] sm:$0x3]
      %v101 = vld [vmem:[%s1] sm:$0x3]
      %103 = vset.pattern.permute.xlu0 0
      %104 = vperm.xlu0 %103, %v101
      %v105 = vpop.permute.xlu0 %104
      %v107 = vrcp.pop %v105
      %v108 = vmul.f32 %v100, %v107
      %v109 = vld [vmem:[#allocation6] sm:$0xff]
      %v110 = vld [vmem:[#allocation6 + $0x8] sm:$0xff]
      %v111 = vld [vmem:[#allocation6 + $0x10] sm:$0xff]
      %v112 = vld [vmem:[#allocation6 + $0x18] sm:$0xff]
      %v113 = vld [vmem:[#allocation6 + $0x20] sm:$0xff]
      %v114 = vld [vmem:[#allocation6 + $0x28] sm:$0xff]
      %v115 = vld [vmem:[#allocation6 + $0x30] sm:$0xff]
      %v116 = vld [vmem:[#allocation6 + $0x38] sm:$0xff]
      %v117 = vld [vmem:[#allocation6 + $0x40] sm:$0xff]
      %v118 = vld [vmem:[#allocation6 + $0x48] sm:$0xff]
      %v119 = vld [vmem:[#allocation6 + $0x50] sm:$0xff]
      %v120 = vld [vmem:[#allocation6 + $0x58] sm:$0xff]
      %v121 = vld [vmem:[#allocation6 + $0x60] sm:$0xff]
      %v122 = vld [vmem:[#allocation6 + $0x68] sm:$0xff]
      %v123 = vld [vmem:[#allocation6 + $0x70] sm:$0xff]
      %v124 = vld [vmem:[#allocation6 + $0x78] sm:$0xff]
      %v126 = vsel %vm74, %v108, 0
      %128 = vmatprep.subr.mxu0 %v110
      %129 = vmatpush1.msra.mxu0 %v109
      %130 = vmatprep.subr.mxu0 %v114
      %131 = vmatpush1.msra.mxu0 %v113
      %132 = vmatprep.subr.mxu0 %v118
      %133 = vmatpush1.msra.mxu0 %v117
      %134 = vmatprep.subr.mxu0 %v122
      %135 = vmatpush1.msra.mxu0 %v121
      %136 = vmatprep.subr.mxu0 0.0
      %137 = vmatpush1.msra.mxu0 0.0
      %138 = vmatprep.subr.mxu0 0.0
      %139 = vmatpush1.msra.mxu0 0.0
      %140 = vmatprep.subr.mxu0 0.0
      %141 = vmatpush1.msra.mxu0 0.0
      %142 = vmatprep.subr.mxu0 0.0
      %143 = vmatpush1.msra.mxu0 0.0
      %144 = vmatprep.subr.mxu0 0.0
      %145 = vmatpush1.msra.mxu0 0.0
      %146 = vmatprep.subr.mxu0 0.0
      %147 = vmatpush1.msra.mxu0 0.0
      %148 = vmatprep.subr.mxu0 0.0
      %149 = vmatpush1.msra.mxu0 0.0
      %150 = vmatprep.subr.mxu0 0.0
      %151 = vmatpush1.msra.mxu0 0.0
      %152 = vmatprep.subr.mxu0 0.0
      %153 = vmatpush1.msra.mxu0 0.0
      %154 = vmatprep.subr.mxu0 0.0
      %155 = vmatpush1.msra.mxu0 0.0
      %156 = vmatprep.subr.mxu0 0.0
      %157 = vmatpush1.msra.mxu0 0.0
      %158 = vmatprep.subr.mxu0 0.0
      %159 = vmatpush1.msra.mxu0 0.0
      %160 = vmatprep.subr.mxu0 0.0
      %161 = vmatpush1.msra.mxu0 0.0
      %162 = vmatprep.subr.mxu0 0.0
      %163 = vmatpush1.msra.mxu0 0.0
      %164 = vmatprep.subr.mxu0 0.0
      %165 = vmatpush1.msra.mxu0 0.0
      %166 = vmatprep.subr.mxu0 0.0
      %167 = vmatpush1.msra.mxu0 0.0
      %168 = vmatprep.subr.mxu0 0.0
      %169 = vmatpush1.msra.mxu0 0.0
      %170 = vmatprep.subr.mxu0 0.0
      %171 = vmatpush1.msra.mxu0 0.0
      %172 = vmatprep.subr.mxu0 0.0
      %173 = vmatpush1.msra.mxu0 0.0
      %174 = vmatprep.subr.mxu0 0.0
      %175 = vmatpush1.msra.mxu0 0.0
      %176 = vmatprep.subr.mxu0 0.0
      %177 = vmatpush1.msra.mxu0 0.0
      %178 = vmatprep.subr.mxu0 0.0
      %179 = vmatpush1.msra.mxu0 0.0
      %180 = vmatprep.subr.mxu0 0.0
      %181 = vmatpush1.msra.mxu0 0.0
      %182 = vmatprep.subr.mxu0 0.0
      %183 = vmatpush1.msra.mxu0 0.0
      %184 = vmatprep.subr.mxu0 0.0
      %185 = vmatpush1.msra.mxu0 0.0
      %186 = vmatprep.subr.mxu0 0.0
      %187 = vmatpush1.msra.mxu0 0.0
      %188 = vmatprep.subr.mxu0 0.0
      %189 = vmatpush1.msra.mxu0 0.0
      %190 = vmatprep.subr.mxu0 0.0
      %191 = vmatpush1.msra.mxu0 0.0
      %192 = vmatprep.mubr.f32.mxu0 0.0
      %193 = vmatmul.mubr.f32.gmra.mrb[0].mxu0 %v126
      %v194 = vpop.f32.mrb[0].mxu0
      %v195 = vadd.f32 0.0, %v194
      %v196 = vpop.f32.mrb[0].mxu0
      %v197 = vadd.f32 0.0, %v196
      %198 = vdwg.mxu0
      %199 = vmatprep.subr.mxu0 %v112
      %200 = vmatpush1.msra.mxu0 %v111
      %201 = vmatprep.subr.mxu0 %v116
      %202 = vmatpush1.msra.mxu0 %v115
      %203 = vmatprep.subr.mxu0 %v120
      %204 = vmatpush1.msra.mxu0 %v119
      %205 = vmatprep.subr.mxu0 %v124
      %206 = vmatpush1.msra.mxu0 %v123
      %207 = vmatprep.subr.mxu0 0.0
      %208 = vmatpush1.msra.mxu0 0.0
      %209 = vmatprep.subr.mxu0 0.0
      %210 = vmatpush1.msra.mxu0 0.0
      %211 = vmatprep.subr.mxu0 0.0
      %212 = vmatpush1.msra.mxu0 0.0
      %213 = vmatprep.subr.mxu0 0.0
      %214 = vmatpush1.msra.mxu0 0.0
      %215 = vmatprep.subr.mxu0 0.0
      %216 = vmatpush1.msra.mxu0 0.0
      %217 = vmatprep.subr.mxu0 0.0
      %218 = vmatpush1.msra.mxu0 0.0
      %219 = vmatprep.subr.mxu0 0.0
      %220 = vmatpush1.msra.mxu0 0.0
      %221 = vmatprep.subr.mxu0 0.0
      %222 = vmatpush1.msra.mxu0 0.0
      %223 = vmatprep.subr.mxu0 0.0
      %224 = vmatpush1.msra.mxu0 0.0
      %225 = vmatprep.subr.mxu0 0.0
      %226 = vmatpush1.msra.mxu0 0.0
      %227 = vmatprep.subr.mxu0 0.0
      %228 = vmatpush1.msra.mxu0 0.0
      %229 = vmatprep.subr.mxu0 0.0
      %230 = vmatpush1.msra.mxu0 0.0
      %231 = vmatprep.subr.mxu0 0.0
      %232 = vmatpush1.msra.mxu0 0.0
      %233 = vmatprep.subr.mxu0 0.0
      %234 = vmatpush1.msra.mxu0 0.0
      %235 = vmatprep.subr.mxu0 0.0
      %236 = vmatpush1.msra.mxu0 0.0
      %237 = vmatprep.subr.mxu0 0.0
      %238 = vmatpush1.msra.mxu0 0.0
      %239 = vmatprep.subr.mxu0 0.0
      %240 = vmatpush1.msra.mxu0 0.0
      %241 = vmatprep.subr.mxu0 0.0
      %242 = vmatpush1.msra.mxu0 0.0
      %243 = vmatprep.subr.mxu0 0.0
      %244 = vmatpush1.msra.mxu0 0.0
      %245 = vmatprep.subr.mxu0 0.0
      %246 = vmatpush1.msra.mxu0 0.0
      %247 = vmatprep.subr.mxu0 0.0
      %248 = vmatpush1.msra.mxu0 0.0
      %249 = vmatprep.subr.mxu0 0.0
      %250 = vmatpush1.msra.mxu0 0.0
      %251 = vmatprep.subr.mxu0 0.0
      %252 = vmatpush1.msra.mxu0 0.0
      %253 = vmatprep.subr.mxu0 0.0
      %254 = vmatpush1.msra.mxu0 0.0
      %255 = vmatprep.subr.mxu0 0.0
      %256 = vmatpush1.msra.mxu0 0.0
      %257 = vmatprep.subr.mxu0 0.0
      %258 = vmatpush1.msra.mxu0 0.0
      %259 = vmatprep.subr.mxu0 0.0
      %260 = vmatpush1.msra.mxu0 0.0
      %261 = vmatprep.subr.mxu0 0.0
      %262 = vmatpush1.msra.mxu0 0.0
      %263 = vmatprep.mubr.f32.mxu0 0.0
      %264 = vmatmul.mubr.f32.gmra.mrb[0].mxu0 %v126
      %v265 = vpop.f32.mrb[0].mxu0
      %v266 = vadd.f32 0.0, %v265
      %v267 = vpop.f32.mrb[0].mxu0
      %v268 = vadd.f32 0.0, %v267
      %269 = vdwg.mxu0
      %v270 = vmul.f32 %v195, 0.5
      %v271 = vmul.f32 %v197, 0.5
      %v272 = vmul.f32 %v266, 0.5
      %v273 = vmul.f32 %v268, 0.5
      %v274 = vmul.f32 %v195, 0.70710677
      %v275 = vmul.f32 %v197, 0.70710677
      %v276 = vmul.f32 %v266, 0.70710677
      %v277 = vmul.f32 %v268, 0.70710677
      %vm278 = vcmp.ge.f32.partialorder %v274, 0.0
      %vm279 = vcmp.ge.f32.partialorder %v275, 0.0
      %vm280 = vcmp.ge.f32.partialorder %v276, 0.0
      %vm281 = vcmp.ge.f32.partialorder %v277, 0.0
      %v282 = vsel %vm278, 1.0, -1.0
      %v283 = vsel %vm279, 1.0, -1.0
      %v284 = vsel %vm280, 1.0, -1.0
      %v285 = vsel %vm281, 1.0, -1.0
      %v286 = vand.u32 2147483647, %v274
      %v287 = vand.u32 2147483647, %v275
      %v288 = vand.u32 2147483647, %v276
      %v289 = vand.u32 2147483647, %v277
      %v290 = vmul.f32 %v286, 0.3275911
      %v291 = vmul.f32 %v287, 0.3275911
      %v292 = vmul.f32 %v288, 0.3275911
      %v293 = vmul.f32 %v289, 0.3275911
      %v294 = vadd.f32 %v290, 1.0
      %v295 = vadd.f32 %v291, 1.0
      %v296 = vadd.f32 %v292, 1.0
      %v297 = vadd.f32 %v293, 1.0
      %v298 = vrcp.pop %v294
      %v299 = vmul.f32 1.0, %v298
      %v300 = vrcp.pop %v295
      %v301 = vmul.f32 1.0, %v300
      %v302 = vrcp.pop %v296
      %v303 = vmul.f32 1.0, %v302
      %v304 = vrcp.pop %v297
      %v305 = vmul.f32 1.0, %v304
      %v306 = vmul.f32 %v299, 1.0614054
      %v307 = vmul.f32 %v301, 1.0614054
      %v308 = vmul.f32 %v303, 1.0614054
      %v309 = vmul.f32 %v305, 1.0614054
      %v310 = vadd.f32 %v306, -1.4531521
      %v311 = vadd.f32 %v307, -1.4531521
      %v312 = vadd.f32 %v308, -1.4531521
      %v313 = vadd.f32 %v309, -1.4531521
      %v314 = vmul.f32 %v310, %v299
      %v315 = vmul.f32 %v311, %v301
      %v316 = vmul.f32 %v312, %v303
      %v317 = vmul.f32 %v313, %v305
      %v318 = vadd.f32 %v314, 1.4214138
      %v319 = vadd.f32 %v315, 1.4214138
      %v320 = vadd.f32 %v316, 1.4214138
      %v321 = vadd.f32 %v317, 1.4214138
      %v322 = vmul.f32 %v318, %v299
      %v323 = vmul.f32 %v319, %v301
      %v324 = vmul.f32 %v320, %v303
      %v325 = vmul.f32 %v321, %v305
      %v326 = vadd.f32 %v322, -0.28449672
      %v327 = vadd.f32 %v323, -0.28449672
      %v328 = vadd.f32 %v324, -0.28449672
      %v329 = vadd.f32 %v325, -0.28449672
      %v330 = vmul.f32 %v326, %v299
      %v331 = vmul.f32 %v327, %v301
      %v332 = vmul.f32 %v328, %v303
      %v333 = vmul.f32 %v329, %v305
      %v334 = vadd.f32 %v330, 0.2548296
      %v335 = vadd.f32 %v331, 0.2548296
      %v336 = vadd.f32 %v332, 0.2548296
      %v337 = vadd.f32 %v333, 0.2548296
      %v338 = vmul.f32 %v334, %v299
      %v339 = vmul.f32 %v335, %v301
      %v340 = vmul.f32 %v336, %v303
      %v341 = vmul.f32 %v337, %v305
      %v342 = vsub.f32 0.0, %v286
      %v343 = vsub.f32 0.0, %v287
      %v344 = vsub.f32 0.0, %v288
      %v345 = vsub.f32 0.0, %v289
      %v346 = vmul.f32 %v342, %v286
      %v347 = vmul.f32 %v343, %v287
      %v348 = vmul.f32 %v344, %v288
      %v349 = vmul.f32 %v345, %v289
      %v350 = vmul.f32 %v346, 1.442695
      %v351 = vpow.pop %v350
      %v352 = vmul.f32 %v347, 1.442695
      %v353 = vpow.pop %v352
      %v354 = vmul.f32 %v348, 1.442695
      %v355 = vpow.pop %v354
      %v356 = vmul.f32 %v349, 1.442695
      %v357 = vpow.pop %v356
      %v358 = vmul.f32 %v338, %v351
      %v359 = vmul.f32 %v339, %v353
      %v360 = vmul.f32 %v340, %v355
      %v361 = vmul.f32 %v341, %v357
      %v362 = vsub.f32 1.0, %v358
      %v363 = vsub.f32 1.0, %v359
      %v364 = vsub.f32 1.0, %v360
      %v365 = vsub.f32 1.0, %v361
      %v366 = vmul.f32 %v282, %v362
      %v367 = vmul.f32 %v283, %v363
      %v368 = vmul.f32 %v284, %v364
      %v369 = vmul.f32 %v285, %v365
      %v370 = vadd.f32 %v366, 1.0
      %v371 = vadd.f32 %v367, 1.0
      %v372 = vadd.f32 %v368, 1.0
      %v373 = vadd.f32 %v369, 1.0
      %v374 = vmul.f32 %v270, %v370
      %v375 = vmul.f32 %v271, %v371
      %v376 = vmul.f32 %v272, %v372
      %v377 = vmul.f32 %v273, %v373
      %v378 = vld [vmem:[#allocation8] sm:$0xff]
      %v379 = vld [vmem:[#allocation8 + $0x8] sm:$0xff]
      %v380 = vld [vmem:[#allocation8 + $0x10] sm:$0xff]
      %v381 = vld [vmem:[#allocation8 + $0x18] sm:$0xff]
      %v382 = vld [vmem:[#allocation8 + $0x20] sm:$0xff]
      %v383 = vld [vmem:[#allocation8 + $0x28] sm:$0xff]
      %v384 = vld [vmem:[#allocation8 + $0x30] sm:$0xff]
      %v385 = vld [vmem:[#allocation8 + $0x38] sm:$0xff]
      %v386 = vld [vmem:[#allocation8 + $0x40] sm:$0xff]
      %v387 = vld [vmem:[#allocation8 + $0x48] sm:$0xff]
      %v388 = vld [vmem:[#allocation8 + $0x50] sm:$0xff]
      %v389 = vld [vmem:[#allocation8 + $0x58] sm:$0xff]
      %v390 = vld [vmem:[#allocation8 + $0x60] sm:$0xff]
      %v391 = vld [vmem:[#allocation8 + $0x68] sm:$0xff]
      %v392 = vld [vmem:[#allocation8 + $0x70] sm:$0xff]
      %v393 = vld [vmem:[#allocation8 + $0x78] sm:$0xff]
      %v394 = vld [vmem:[#allocation8 + $0x80] sm:$0xff]
      %v395 = vld [vmem:[#allocation8 + $0x88] sm:$0xff]
      %v396 = vld [vmem:[#allocation8 + $0x90] sm:$0xff]
      %v397 = vld [vmem:[#allocation8 + $0x98] sm:$0xff]
      %v398 = vld [vmem:[#allocation8 + $0xa0] sm:$0xff]
      %v399 = vld [vmem:[#allocation8 + $0xa8] sm:$0xff]
      %v400 = vld [vmem:[#allocation8 + $0xb0] sm:$0xff]
      %v401 = vld [vmem:[#allocation8 + $0xb8] sm:$0xff]
      %v402 = vld [vmem:[#allocation8 + $0xc0] sm:$0xff]
      %v403 = vld [vmem:[#allocation8 + $0xc8] sm:$0xff]
      %v404 = vld [vmem:[#allocation8 + $0xd0] sm:$0xff]
      %v405 = vld [vmem:[#allocation8 + $0xd8] sm:$0xff]
      %v406 = vld [vmem:[#allocation8 + $0xe0] sm:$0xff]
      %v407 = vld [vmem:[#allocation8 + $0xe8] sm:$0xff]
      %v408 = vld [vmem:[#allocation8 + $0xf0] sm:$0xff]
      %v409 = vld [vmem:[#allocation8 + $0xf8] sm:$0xff]
      %v410 = vld [vmem:[#allocation8 + $0x100] sm:$0xff]
      %v411 = vld [vmem:[#allocation8 + $0x108] sm:$0xff]
      %v412 = vld [vmem:[#allocation8 + $0x110] sm:$0xff]
      %v413 = vld [vmem:[#allocation8 + $0x118] sm:$0xff]
      %v414 = vld [vmem:[#allocation8 + $0x120] sm:$0xff]
      %v415 = vld [vmem:[#allocation8 + $0x128] sm:$0xff]
      %v416 = vld [vmem:[#allocation8 + $0x130] sm:$0xff]
      %v417 = vld [vmem:[#allocation8 + $0x138] sm:$0xff]
      %v418 = vld [vmem:[#allocation8 + $0x140] sm:$0xff]
      %v419 = vld [vmem:[#allocation8 + $0x148] sm:$0xff]
      %v420 = vld [vmem:[#allocation8 + $0x150] sm:$0xff]
      %v421 = vld [vmem:[#allocation8 + $0x158] sm:$0xff]
      %v422 = vld [vmem:[#allocation8 + $0x160] sm:$0xff]
      %v423 = vld [vmem:[#allocation8 + $0x168] sm:$0xff]
      %v424 = vld [vmem:[#allocation8 + $0x170] sm:$0xff]
      %v425 = vld [vmem:[#allocation8 + $0x178] sm:$0xff]
      %v426 = vld [vmem:[#allocation8 + $0x180] sm:$0xff]
      %v427 = vld [vmem:[#allocation8 + $0x188] sm:$0xff]
      %v428 = vld [vmem:[#allocation8 + $0x190] sm:$0xff]
      %v429 = vld [vmem:[#allocation8 + $0x198] sm:$0xff]
      %v430 = vld [vmem:[#allocation8 + $0x1a0] sm:$0xff]
      %v431 = vld [vmem:[#allocation8 + $0x1a8] sm:$0xff]
      %v432 = vld [vmem:[#allocation8 + $0x1b0] sm:$0xff]
      %v433 = vld [vmem:[#allocation8 + $0x1b8] sm:$0xff]
      %v434 = vld [vmem:[#allocation8 + $0x1c0] sm:$0xff]
      %v435 = vld [vmem:[#allocation8 + $0x1c8] sm:$0xff]
      %v436 = vld [vmem:[#allocation8 + $0x1d0] sm:$0xff]
      %v437 = vld [vmem:[#allocation8 + $0x1d8] sm:$0xff]
      %v438 = vld [vmem:[#allocation8 + $0x1e0] sm:$0xff]
      %v439 = vld [vmem:[#allocation8 + $0x1e8] sm:$0xff]
      %v440 = vld [vmem:[#allocation8 + $0x1f0] sm:$0xff]
      %v441 = vld [vmem:[#allocation8 + $0x1f8] sm:$0xff]
      %v442 = vld [vmem:[#allocation8 + $0x200] sm:$0xff]
      %v443 = vld [vmem:[#allocation8 + $0x208] sm:$0xff]
      %v444 = vld [vmem:[#allocation8 + $0x210] sm:$0xff]
      %v445 = vld [vmem:[#allocation8 + $0x218] sm:$0xff]
      %v446 = vld [vmem:[#allocation8 + $0x220] sm:$0xff]
      %v447 = vld [vmem:[#allocation8 + $0x228] sm:$0xff]
      %v448 = vld [vmem:[#allocation8 + $0x230] sm:$0xff]
      %v449 = vld [vmem:[#allocation8 + $0x238] sm:$0xff]
      %v450 = vld [vmem:[#allocation8 + $0x240] sm:$0xff]
      %v451 = vld [vmem:[#allocation8 + $0x248] sm:$0xff]
      %v452 = vld [vmem:[#allocation8 + $0x250] sm:$0xff]
      %v453 = vld [vmem:[#allocation8 + $0x258] sm:$0xff]
      %v454 = vld [vmem:[#allocation8 + $0x260] sm:$0xff]
      %v455 = vld [vmem:[#allocation8 + $0x268] sm:$0xff]
      %v456 = vld [vmem:[#allocation8 + $0x270] sm:$0xff]
      %v457 = vld [vmem:[#allocation8 + $0x278] sm:$0xff]
      %v458 = vld [vmem:[#allocation8 + $0x280] sm:$0xff]
      %v459 = vld [vmem:[#allocation8 + $0x288] sm:$0xff]
      %v460 = vld [vmem:[#allocation8 + $0x290] sm:$0xff]
      %v461 = vld [vmem:[#allocation8 + $0x298] sm:$0xff]
      %v462 = vld [vmem:[#allocation8 + $0x2a0] sm:$0xff]
      %v463 = vld [vmem:[#allocation8 + $0x2a8] sm:$0xff]
      %v464 = vld [vmem:[#allocation8 + $0x2b0] sm:$0xff]
      %v465 = vld [vmem:[#allocation8 + $0x2b8] sm:$0xff]
      %v466 = vld [vmem:[#allocation8 + $0x2c0] sm:$0xff]
      %v467 = vld [vmem:[#allocation8 + $0x2c8] sm:$0xff]
      %v468 = vld [vmem:[#allocation8 + $0x2d0] sm:$0xff]
      %v469 = vld [vmem:[#allocation8 + $0x2d8] sm:$0xff]
      %v470 = vld [vmem:[#allocation8 + $0x2e0] sm:$0xff]
      %v471 = vld [vmem:[#allocation8 + $0x2e8] sm:$0xff]
      %v472 = vld [vmem:[#allocation8 + $0x2f0] sm:$0xff]
      %v473 = vld [vmem:[#allocation8 + $0x2f8] sm:$0xff]
      %v474 = vld [vmem:[#allocation8 + $0x300] sm:$0xff]
      %v475 = vld [vmem:[#allocation8 + $0x308] sm:$0xff]
      %v476 = vld [vmem:[#allocation8 + $0x310] sm:$0xff]
      %v477 = vld [vmem:[#allocation8 + $0x318] sm:$0xff]
      %v478 = vld [vmem:[#allocation8 + $0x320] sm:$0xff]
      %v479 = vld [vmem:[#allocation8 + $0x328] sm:$0xff]
      %v480 = vld [vmem:[#allocation8 + $0x330] sm:$0xff]
      %v481 = vld [vmem:[#allocation8 + $0x338] sm:$0xff]
      %v482 = vld [vmem:[#allocation8 + $0x340] sm:$0xff]
      %v483 = vld [vmem:[#allocation8 + $0x348] sm:$0xff]
      %v484 = vld [vmem:[#allocation8 + $0x350] sm:$0xff]
      %v485 = vld [vmem:[#allocation8 + $0x358] sm:$0xff]
      %v486 = vld [vmem:[#allocation8 + $0x360] sm:$0xff]
      %v487 = vld [vmem:[#allocation8 + $0x368] sm:$0xff]
      %v488 = vld [vmem:[#allocation8 + $0x370] sm:$0xff]
      %v489 = vld [vmem:[#allocation8 + $0x378] sm:$0xff]
      %v490 = vld [vmem:[#allocation8 + $0x380] sm:$0xff]
      %v491 = vld [vmem:[#allocation8 + $0x388] sm:$0xff]
      %v492 = vld [vmem:[#allocation8 + $0x390] sm:$0xff]
      %v493 = vld [vmem:[#allocation8 + $0x398] sm:$0xff]
      %v494 = vld [vmem:[#allocation8 + $0x3a0] sm:$0xff]
      %v495 = vld [vmem:[#allocation8 + $0x3a8] sm:$0xff]
      %v496 = vld [vmem:[#allocation8 + $0x3b0] sm:$0xff]
      %v497 = vld [vmem:[#allocation8 + $0x3b8] sm:$0xff]
      %v498 = vld [vmem:[#allocation8 + $0x3c0] sm:$0xff]
      %v499 = vld [vmem:[#allocation8 + $0x3c8] sm:$0xff]
      %v500 = vld [vmem:[#allocation8 + $0x3d0] sm:$0xff]
      %v501 = vld [vmem:[#allocation8 + $0x3d8] sm:$0xff]
      %v502 = vld [vmem:[#allocation8 + $0x3e0] sm:$0xff]
      %v503 = vld [vmem:[#allocation8 + $0x3e8] sm:$0xff]
      %v504 = vld [vmem:[#allocation8 + $0x3f0] sm:$0xff]
      %v505 = vld [vmem:[#allocation8 + $0x3f8] sm:$0xff]
      %v506 = vld [vmem:[#allocation8 + $0x400] sm:$0xff]
      %v507 = vld [vmem:[#allocation8 + $0x408] sm:$0xff]
      %v508 = vld [vmem:[#allocation8 + $0x410] sm:$0xff]
      %v509 = vld [vmem:[#allocation8 + $0x418] sm:$0xff]
      %v510 = vld [vmem:[#allocation8 + $0x420] sm:$0xff]
      %v511 = vld [vmem:[#allocation8 + $0x428] sm:$0xff]
      %v512 = vld [vmem:[#allocation8 + $0x430] sm:$0xff]
      %v513 = vld [vmem:[#allocation8 + $0x438] sm:$0xff]
      %v514 = vld [vmem:[#allocation8 + $0x440] sm:$0xff]
      %v515 = vld [vmem:[#allocation8 + $0x448] sm:$0xff]
      %v516 = vld [vmem:[#allocation8 + $0x450] sm:$0xff]
      %v517 = vld [vmem:[#allocation8 + $0x458] sm:$0xff]
      %v518 = vld [vmem:[#allocation8 + $0x460] sm:$0xff]
      %v519 = vld [vmem:[#allocation8 + $0x468] sm:$0xff]
      %v520 = vld [vmem:[#allocation8 + $0x470] sm:$0xff]
      %v521 = vld [vmem:[#allocation8 + $0x478] sm:$0xff]
      %v522 = vld [vmem:[#allocation8 + $0x480] sm:$0xff]
      %v523 = vld [vmem:[#allocation8 + $0x488] sm:$0xff]
      %v524 = vld [vmem:[#allocation8 + $0x490] sm:$0xff]
      %v525 = vld [vmem:[#allocation8 + $0x498] sm:$0xff]
      %v526 = vld [vmem:[#allocation8 + $0x4a0] sm:$0xff]
      %v527 = vld [vmem:[#allocation8 + $0x4a8] sm:$0xff]
      %v528 = vld [vmem:[#allocation8 + $0x4b0] sm:$0xff]
      %v529 = vld [vmem:[#allocation8 + $0x4b8] sm:$0xff]
      %v530 = vld [vmem:[#allocation8 + $0x4c0] sm:$0xff]
      %v531 = vld [vmem:[#allocation8 + $0x4c8] sm:$0xff]
      %v532 = vld [vmem:[#allocation8 + $0x4d0] sm:$0xff]
      %v533 = vld [vmem:[#allocation8 + $0x4d8] sm:$0xff]
      %v534 = vld [vmem:[#allocation8 + $0x4e0] sm:$0xff]
      %v535 = vld [vmem:[#allocation8 + $0x4e8] sm:$0xff]
      %v536 = vld [vmem:[#allocation8 + $0x4f0] sm:$0xff]
      %v537 = vld [vmem:[#allocation8 + $0x4f8] sm:$0xff]
      %v538 = vld [vmem:[#allocation8 + $0x500] sm:$0xff]
      %v539 = vld [vmem:[#allocation8 + $0x508] sm:$0xff]
      %v540 = vld [vmem:[#allocation8 + $0x510] sm:$0xff]
      %v541 = vld [vmem:[#allocation8 + $0x518] sm:$0xff]
      %v542 = vld [vmem:[#allocation8 + $0x520] sm:$0xff]
      %v543 = vld [vmem:[#allocation8 + $0x528] sm:$0xff]
      %v544 = vld [vmem:[#allocation8 + $0x530] sm:$0xff]
      %v545 = vld [vmem:[#allocation8 + $0x538] sm:$0xff]
      %v546 = vld [vmem:[#allocation8 + $0x540] sm:$0xff]
      %v547 = vld [vmem:[#allocation8 + $0x548] sm:$0xff]
      %v548 = vld [vmem:[#allocation8 + $0x550] sm:$0xff]
      %v549 = vld [vmem:[#allocation8 + $0x558] sm:$0xff]
      %v550 = vld [vmem:[#allocation8 + $0x560] sm:$0xff]
      %v551 = vld [vmem:[#allocation8 + $0x568] sm:$0xff]
      %v552 = vld [vmem:[#allocation8 + $0x570] sm:$0xff]
      %v553 = vld [vmem:[#allocation8 + $0x578] sm:$0xff]
      %v554 = vld [vmem:[#allocation8 + $0x580] sm:$0xff]
      %v555 = vld [vmem:[#allocation8 + $0x588] sm:$0xff]
      %v556 = vld [vmem:[#allocation8 + $0x590] sm:$0xff]
      %v557 = vld [vmem:[#allocation8 + $0x598] sm:$0xff]
      %v558 = vld [vmem:[#allocation8 + $0x5a0] sm:$0xff]
      %v559 = vld [vmem:[#allocation8 + $0x5a8] sm:$0xff]
      %v560 = vld [vmem:[#allocation8 + $0x5b0] sm:$0xff]
      %v561 = vld [vmem:[#allocation8 + $0x5b8] sm:$0xff]
      %v562 = vld [vmem:[#allocation8 + $0x5c0] sm:$0xff]
      %v563 = vld [vmem:[#allocation8 + $0x5c8] sm:$0xff]
      %v564 = vld [vmem:[#allocation8 + $0x5d0] sm:$0xff]
      %v565 = vld [vmem:[#allocation8 + $0x5d8] sm:$0xff]
      %v566 = vld [vmem:[#allocation8 + $0x5e0] sm:$0xff]
      %v567 = vld [vmem:[#allocation8 + $0x5e8] sm:$0xff]
      %v568 = vld [vmem:[#allocation8 + $0x5f0] sm:$0xff]
      %v569 = vld [vmem:[#allocation8 + $0x5f8] sm:$0xff]
      %v570 = vld [vmem:[#allocation8 + $0x600] sm:$0xff]
      %v571 = vld [vmem:[#allocation8 + $0x608] sm:$0xff]
      %v572 = vld [vmem:[#allocation8 + $0x610] sm:$0xff]
      %v573 = vld [vmem:[#allocation8 + $0x618] sm:$0xff]
      %v574 = vld [vmem:[#allocation8 + $0x620] sm:$0xff]
      %v575 = vld [vmem:[#allocation8 + $0x628] sm:$0xff]
      %v576 = vld [vmem:[#allocation8 + $0x630] sm:$0xff]
      %v577 = vld [vmem:[#allocation8 + $0x638] sm:$0xff]
      %v578 = vld [vmem:[#allocation8 + $0x640] sm:$0xff]
      %v579 = vld [vmem:[#allocation8 + $0x648] sm:$0xff]
      %v580 = vld [vmem:[#allocation8 + $0x650] sm:$0xff]
      %v581 = vld [vmem:[#allocation8 + $0x658] sm:$0xff]
      %v582 = vld [vmem:[#allocation8 + $0x660] sm:$0xff]
      %v583 = vld [vmem:[#allocation8 + $0x668] sm:$0xff]
      %v584 = vld [vmem:[#allocation8 + $0x670] sm:$0xff]
      %v585 = vld [vmem:[#allocation8 + $0x678] sm:$0xff]
      %v586 = vld [vmem:[#allocation8 + $0x680] sm:$0xff]
      %v587 = vld [vmem:[#allocation8 + $0x688] sm:$0xff]
      %v588 = vld [vmem:[#allocation8 + $0x690] sm:$0xff]
      %v589 = vld [vmem:[#allocation8 + $0x698] sm:$0xff]
      %v590 = vld [vmem:[#allocation8 + $0x6a0] sm:$0xff]
      %v591 = vld [vmem:[#allocation8 + $0x6a8] sm:$0xff]
      %v592 = vld [vmem:[#allocation8 + $0x6b0] sm:$0xff]
      %v593 = vld [vmem:[#allocation8 + $0x6b8] sm:$0xff]
      %v594 = vld [vmem:[#allocation8 + $0x6c0] sm:$0xff]
      %v595 = vld [vmem:[#allocation8 + $0x6c8] sm:$0xff]
      %v596 = vld [vmem:[#allocation8 + $0x6d0] sm:$0xff]
      %v597 = vld [vmem:[#allocation8 + $0x6d8] sm:$0xff]
      %v598 = vld [vmem:[#allocation8 + $0x6e0] sm:$0xff]
      %v599 = vld [vmem:[#allocation8 + $0x6e8] sm:$0xff]
      %v600 = vld [vmem:[#allocation8 + $0x6f0] sm:$0xff]
      %v601 = vld [vmem:[#allocation8 + $0x6f8] sm:$0xff]
      %v602 = vld [vmem:[#allocation8 + $0x700] sm:$0xff]
      %v603 = vld [vmem:[#allocation8 + $0x708] sm:$0xff]
      %v604 = vld [vmem:[#allocation8 + $0x710] sm:$0xff]
      %v605 = vld [vmem:[#allocation8 + $0x718] sm:$0xff]
      %v606 = vld [vmem:[#allocation8 + $0x720] sm:$0xff]
      %v607 = vld [vmem:[#allocation8 + $0x728] sm:$0xff]
      %v608 = vld [vmem:[#allocation8 + $0x730] sm:$0xff]
      %v609 = vld [vmem:[#allocation8 + $0x738] sm:$0xff]
      %v610 = vld [vmem:[#allocation8 + $0x740] sm:$0xff]
      %v611 = vld [vmem:[#allocation8 + $0x748] sm:$0xff]
      %v612 = vld [vmem:[#allocation8 + $0x750] sm:$0xff]
      %v613 = vld [vmem:[#allocation8 + $0x758] sm:$0xff]
      %v614 = vld [vmem:[#allocation8 + $0x760] sm:$0xff]
      %v615 = vld [vmem:[#allocation8 + $0x768] sm:$0xff]
      %v616 = vld [vmem:[#allocation8 + $0x770] sm:$0xff]
      %v617 = vld [vmem:[#allocation8 + $0x778] sm:$0xff]
      %v618 = vld [vmem:[#allocation8 + $0x780] sm:$0xff]
      %v619 = vld [vmem:[#allocation8 + $0x788] sm:$0xff]
      %v620 = vld [vmem:[#allocation8 + $0x790] sm:$0xff]
      %v621 = vld [vmem:[#allocation8 + $0x798] sm:$0xff]
      %v622 = vld [vmem:[#allocation8 + $0x7a0] sm:$0xff]
      %v623 = vld [vmem:[#allocation8 + $0x7a8] sm:$0xff]
      %v624 = vld [vmem:[#allocation8 + $0x7b0] sm:$0xff]
      %v625 = vld [vmem:[#allocation8 + $0x7b8] sm:$0xff]
      %v626 = vld [vmem:[#allocation8 + $0x7c0] sm:$0xff]
      %v627 = vld [vmem:[#allocation8 + $0x7c8] sm:$0xff]
      %v628 = vld [vmem:[#allocation8 + $0x7d0] sm:$0xff]
      %v629 = vld [vmem:[#allocation8 + $0x7d8] sm:$0xff]
      %v630 = vld [vmem:[#allocation8 + $0x7e0] sm:$0xff]
      %v631 = vld [vmem:[#allocation8 + $0x7e8] sm:$0xff]
      %v632 = vld [vmem:[#allocation8 + $0x7f0] sm:$0xff]
      %v633 = vld [vmem:[#allocation8 + $0x7f8] sm:$0xff]
      %634 = vmatprep.subr.mxu0 %v379
      %635 = vmatpush1.msra.mxu0 %v378
      %636 = vmatprep.subr.mxu0 %v383
      %637 = vmatpush1.msra.mxu0 %v382
      %638 = vmatprep.subr.mxu0 %v387
      %639 = vmatpush1.msra.mxu0 %v386
      %640 = vmatprep.subr.mxu0 %v391
      %641 = vmatpush1.msra.mxu0 %v390
      %642 = vmatprep.subr.mxu0 %v395
      %643 = vmatpush1.msra.mxu0 %v394
      %644 = vmatprep.subr.mxu0 %v399
      %645 = vmatpush1.msra.mxu0 %v398
      %646 = vmatprep.subr.mxu0 %v403
      %647 = vmatpush1.msra.mxu0 %v402
      %648 = vmatprep.subr.mxu0 %v407
      %649 = vmatpush1.msra.mxu0 %v406
      %650 = vmatprep.subr.mxu0 %v411
      %651 = vmatpush1.msra.mxu0 %v410
      %652 = vmatprep.subr.mxu0 %v415
      %653 = vmatpush1.msra.mxu0 %v414
      %654 = vmatprep.subr.mxu0 %v419
      %655 = vmatpush1.msra.mxu0 %v418
      %656 = vmatprep.subr.mxu0 %v423
      %657 = vmatpush1.msra.mxu0 %v422
      %658 = vmatprep.subr.mxu0 %v427
      %659 = vmatpush1.msra.mxu0 %v426
      %660 = vmatprep.subr.mxu0 %v431
      %661 = vmatpush1.msra.mxu0 %v430
      %662 = vmatprep.subr.mxu0 %v435
      %663 = vmatpush1.msra.mxu0 %v434
      %664 = vmatprep.subr.mxu0 %v439
      %665 = vmatpush1.msra.mxu0 %v438
      %666 = vmatprep.subr.mxu0 %v443
      %667 = vmatpush1.msra.mxu0 %v442
      %668 = vmatprep.subr.mxu0 %v447
      %669 = vmatpush1.msra.mxu0 %v446
      %670 = vmatprep.subr.mxu0 %v451
      %671 = vmatpush1.msra.mxu0 %v450
      %672 = vmatprep.subr.mxu0 %v455
      %673 = vmatpush1.msra.mxu0 %v454
      %674 = vmatprep.subr.mxu0 %v459
      %675 = vmatpush1.msra.mxu0 %v458
      %676 = vmatprep.subr.mxu0 %v463
      %677 = vmatpush1.msra.mxu0 %v462
      %678 = vmatprep.subr.mxu0 %v467
      %679 = vmatpush1.msra.mxu0 %v466
      %680 = vmatprep.subr.mxu0 %v471
      %681 = vmatpush1.msra.mxu0 %v470
      %682 = vmatprep.subr.mxu0 %v475
      %683 = vmatpush1.msra.mxu0 %v474
      %684 = vmatprep.subr.mxu0 %v479
      %685 = vmatpush1.msra.mxu0 %v478
      %686 = vmatprep.subr.mxu0 %v483
      %687 = vmatpush1.msra.mxu0 %v482
      %688 = vmatprep.subr.mxu0 %v487
      %689 = vmatpush1.msra.mxu0 %v486
      %690 = vmatprep.subr.mxu0 %v491
      %691 = vmatpush1.msra.mxu0 %v490
      %692 = vmatprep.subr.mxu0 %v495
      %693 = vmatpush1.msra.mxu0 %v494
      %694 = vmatprep.subr.mxu0 %v499
      %695 = vmatpush1.msra.mxu0 %v498
      %696 = vmatprep.subr.mxu0 %v503
      %697 = vmatpush1.msra.mxu0 %v502
      %698 = vmatprep.mubr.f32.mxu0 %v375
      %699 = vmatmul.mubr.f32.gmra.mrb[0].mxu0 %v374
      %v700 = vpop.f32.mrb[0].mxu0
      %v701 = vadd.f32 0.0, %v700
      %v702 = vpop.f32.mrb[0].mxu0
      %v703 = vadd.f32 0.0, %v702
      %704 = vdwg.mxu0
      %705 = vmatprep.subr.mxu0 %v507
      %706 = vmatpush1.msra.mxu0 %v506
      %707 = vmatprep.subr.mxu0 %v511
      %708 = vmatpush1.msra.mxu0 %v510
      %709 = vmatprep.subr.mxu0 %v515
      %710 = vmatpush1.msra.mxu0 %v514
      %711 = vmatprep.subr.mxu0 %v519
      %712 = vmatpush1.msra.mxu0 %v518
      %713 = vmatprep.subr.mxu0 %v523
      %714 = vmatpush1.msra.mxu0 %v522
      %715 = vmatprep.subr.mxu0 %v527
      %716 = vmatpush1.msra.mxu0 %v526
      %717 = vmatprep.subr.mxu0 %v531
      %718 = vmatpush1.msra.mxu0 %v530
      %719 = vmatprep.subr.mxu0 %v535
      %720 = vmatpush1.msra.mxu0 %v534
      %721 = vmatprep.subr.mxu0 %v539
      %722 = vmatpush1.msra.mxu0 %v538
      %723 = vmatprep.subr.mxu0 %v543
      %724 = vmatpush1.msra.mxu0 %v542
      %725 = vmatprep.subr.mxu0 %v547
      %726 = vmatpush1.msra.mxu0 %v546
      %727 = vmatprep.subr.mxu0 %v551
      %728 = vmatpush1.msra.mxu0 %v550
      %729 = vmatprep.subr.mxu0 %v555
      %730 = vmatpush1.msra.mxu0 %v554
      %731 = vmatprep.subr.mxu0 %v559
      %732 = vmatpush1.msra.mxu0 %v558
      %733 = vmatprep.subr.mxu0 %v563
      %734 = vmatpush1.msra.mxu0 %v562
      %735 = vmatprep.subr.mxu0 %v567
      %736 = vmatpush1.msra.mxu0 %v566
      %737 = vmatprep.subr.mxu0 %v571
      %738 = vmatpush1.msra.mxu0 %v570
      %739 = vmatprep.subr.mxu0 %v575
      %740 = vmatpush1.msra.mxu0 %v574
      %741 = vmatprep.subr.mxu0 %v579
      %742 = vmatpush1.msra.mxu0 %v578
      %743 = vmatprep.subr.mxu0 %v583
      %744 = vmatpush1.msra.mxu0 %v582
      %745 = vmatprep.subr.mxu0 %v587
      %746 = vmatpush1.msra.mxu0 %v586
      %747 = vmatprep.subr.mxu0 %v591
      %748 = vmatpush1.msra.mxu0 %v590
      %749 = vmatprep.subr.mxu0 %v595
      %750 = vmatpush1.msra.mxu0 %v594
      %751 = vmatprep.subr.mxu0 %v599
      %752 = vmatpush1.msra.mxu0 %v598
      %753 = vmatprep.subr.mxu0 %v603
      %754 = vmatpush1.msra.mxu0 %v602
      %755 = vmatprep.subr.mxu0 %v607
      %756 = vmatpush1.msra.mxu0 %v606
      %757 = vmatprep.subr.mxu0 %v611
      %758 = vmatpush1.msra.mxu0 %v610
      %759 = vmatprep.subr.mxu0 %v615
      %760 = vmatpush1.msra.mxu0 %v614
      %761 = vmatprep.subr.mxu0 %v619
      %762 = vmatpush1.msra.mxu0 %v618
      %763 = vmatprep.subr.mxu0 %v623
      %764 = vmatpush1.msra.mxu0 %v622
      %765 = vmatprep.subr.mxu0 %v627
      %766 = vmatpush1.msra.mxu0 %v626
      %767 = vmatprep.subr.mxu0 %v631
      %768 = vmatpush1.msra.mxu0 %v630
      %769 = vmatprep.mubr.f32.mxu0 %v377
      %770 = vmatmul.mubr.f32.gmra.mrb[0].mxu0 %v376
      %v771 = vpop.f32.mrb[0].mxu0
      %v772 = vadd.f32 %v701, %v771
      %v773 = vpop.f32.mrb[0].mxu0
      %v774 = vadd.f32 %v703, %v773
      %775 = vdwg.mxu0
      %776 = vmatprep.subr.mxu0 %v381
      %777 = vmatpush1.msra.mxu0 %v380
      %778 = vmatprep.subr.mxu0 %v385
      %779 = vmatpush1.msra.mxu0 %v384
      %780 = vmatprep.subr.mxu0 %v389
      %781 = vmatpush1.msra.mxu0 %v388
      %782 = vmatprep.subr.mxu0 %v393
      %783 = vmatpush1.msra.mxu0 %v392
      %784 = vmatprep.subr.mxu0 %v397
      %785 = vmatpush1.msra.mxu0 %v396
      %786 = vmatprep.subr.mxu0 %v401
      %787 = vmatpush1.msra.mxu0 %v400
      %788 = vmatprep.subr.mxu0 %v405
      %789 = vmatpush1.msra.mxu0 %v404
      %790 = vmatprep.subr.mxu0 %v409
      %791 = vmatpush1.msra.mxu0 %v408
      %792 = vmatprep.subr.mxu0 %v413
      %793 = vmatpush1.msra.mxu0 %v412
      %794 = vmatprep.subr.mxu0 %v417
      %795 = vmatpush1.msra.mxu0 %v416
      %796 = vmatprep.subr.mxu0 %v421
      %797 = vmatpush1.msra.mxu0 %v420
      %798 = vmatprep.subr.mxu0 %v425
      %799 = vmatpush1.msra.mxu0 %v424
      %800 = vmatprep.subr.mxu0 %v429
      %801 = vmatpush1.msra.mxu0 %v428
      %802 = vmatprep.subr.mxu0 %v433
      %803 = vmatpush1.msra.mxu0 %v432
      %804 = vmatprep.subr.mxu0 %v437
      %805 = vmatpush1.msra.mxu0 %v436
      %806 = vmatprep.subr.mxu0 %v441
      %807 = vmatpush1.msra.mxu0 %v440
      %808 = vmatprep.subr.mxu0 %v445
      %809 = vmatpush1.msra.mxu0 %v444
      %810 = vmatprep.subr.mxu0 %v449
      %811 = vmatpush1.msra.mxu0 %v448
      %812 = vmatprep.subr.mxu0 %v453
      %813 = vmatpush1.msra.mxu0 %v452
      %814 = vmatprep.subr.mxu0 %v457
      %815 = vmatpush1.msra.mxu0 %v456
      %816 = vmatprep.subr.mxu0 %v461
      %817 = vmatpush1.msra.mxu0 %v460
      %818 = vmatprep.subr.mxu0 %v465
      %819 = vmatpush1.msra.mxu0 %v464
      %820 = vmatprep.subr.mxu0 %v469
      %821 = vmatpush1.msra.mxu0 %v468
      %822 = vmatprep.subr.mxu0 %v473
      %823 = vmatpush1.msra.mxu0 %v472
      %824 = vmatprep.subr.mxu0 %v477
      %825 = vmatpush1.msra.mxu0 %v476
      %826 = vmatprep.subr.mxu0 %v481
      %827 = vmatpush1.msra.mxu0 %v480
      %828 = vmatprep.subr.mxu0 %v485
      %829 = vmatpush1.msra.mxu0 %v484
      %830 = vmatprep.subr.mxu0 %v489
      %831 = vmatpush1.msra.mxu0 %v488
      %832 = vmatprep.subr.mxu0 %v493
      %833 = vmatpush1.msra.mxu0 %v492
      %834 = vmatprep.subr.mxu0 %v497
      %835 = vmatpush1.msra.mxu0 %v496
      %836 = vmatprep.subr.mxu0 %v501
      %837 = vmatpush1.msra.mxu0 %v500
      %838 = vmatprep.subr.mxu0 %v505
      %839 = vmatpush1.msra.mxu0 %v504
      %840 = vmatprep.mubr.f32.mxu0 %v375
      %841 = vmatmul.mubr.f32.gmra.mrb[0].mxu0 %v374
      %v842 = vpop.f32.mrb[0].mxu0
      %v843 = vadd.f32 0.0, %v842
      %v844 = vpop.f32.mrb[0].mxu0
      %v845 = vadd.f32 0.0, %v844
      %846 = vdwg.mxu0
      %847 = vmatprep.subr.mxu0 %v509
      %848 = vmatpush1.msra.mxu0 %v508
      %849 = vmatprep.subr.mxu0 %v513
      %850 = vmatpush1.msra.mxu0 %v512
      %851 = vmatprep.subr.mxu0 %v517
      %852 = vmatpush1.msra.mxu0 %v516
      %853 = vmatprep.subr.mxu0 %v521
      %854 = vmatpush1.msra.mxu0 %v520
      %855 = vmatprep.subr.mxu0 %v525
      %856 = vmatpush1.msra.mxu0 %v524
      %857 = vmatprep.subr.mxu0 %v529
      %858 = vmatpush1.msra.mxu0 %v528
      %859 = vmatprep.subr.mxu0 %v533
      %860 = vmatpush1.msra.mxu0 %v532
      %861 = vmatprep.subr.mxu0 %v537
      %862 = vmatpush1.msra.mxu0 %v536
      %863 = vmatprep.subr.mxu0 %v541
      %864 = vmatpush1.msra.mxu0 %v540
      %865 = vmatprep.subr.mxu0 %v545
      %866 = vmatpush1.msra.mxu0 %v544
      %867 = vmatprep.subr.mxu0 %v549
      %868 = vmatpush1.msra.mxu0 %v548
      %869 = vmatprep.subr.mxu0 %v553
      %870 = vmatpush1.msra.mxu0 %v552
      %871 = vmatprep.subr.mxu0 %v557
      %872 = vmatpush1.msra.mxu0 %v556
      %873 = vmatprep.subr.mxu0 %v561
      %874 = vmatpush1.msra.mxu0 %v560
      %875 = vmatprep.subr.mxu0 %v565
      %876 = vmatpush1.msra.mxu0 %v564
      %877 = vmatprep.subr.mxu0 %v569
      %878 = vmatpush1.msra.mxu0 %v568
      %879 = vmatprep.subr.mxu0 %v573
      %880 = vmatpush1.msra.mxu0 %v572
      %881 = vmatprep.subr.mxu0 %v577
      %882 = vmatpush1.msra.mxu0 %v576
      %883 = vmatprep.subr.mxu0 %v581
      %884 = vmatpush1.msra.mxu0 %v580
      %885 = vmatprep.subr.mxu0 %v585
      %886 = vmatpush1.msra.mxu0 %v584
      %887 = vmatprep.subr.mxu0 %v589
      %888 = vmatpush1.msra.mxu0 %v588
      %889 = vmatprep.subr.mxu0 %v593
      %890 = vmatpush1.msra.mxu0 %v592
      %891 = vmatprep.subr.mxu0 %v597
      %892 = vmatpush1.msra.mxu0 %v596
      %893 = vmatprep.subr.mxu0 %v601
      %894 = vmatpush1.msra.mxu0 %v600
      %895 = vmatprep.subr.mxu0 %v605
      %896 = vmatpush1.msra.mxu0 %v604
      %897 = vmatprep.subr.mxu0 %v609
      %898 = vmatpush1.msra.mxu0 %v608
      %899 = vmatprep.subr.mxu0 %v613
      %900 = vmatpush1.msra.mxu0 %v612
      %901 = vmatprep.subr.mxu0 %v617
      %902 = vmatpush1.msra.mxu0 %v616
      %903 = vmatprep.subr.mxu0 %v621
      %904 = vmatpush1.msra.mxu0 %v620
      %905 = vmatprep.subr.mxu0 %v625
      %906 = vmatpush1.msra.mxu0 %v624
      %907 = vmatprep.subr.mxu0 %v629
      %908 = vmatpush1.msra.mxu0 %v628
      %909 = vmatprep.subr.mxu0 %v633
      %910 = vmatpush1.msra.mxu0 %v632
      %911 = vmatprep.mubr.f32.mxu0 %v377
      %912 = vmatmul.mubr.f32.gmra.mrb[0].mxu0 %v376
      %v913 = vpop.f32.mrb[0].mxu0
      %v914 = vadd.f32 %v843, %v913
      %v915 = vpop.f32.mrb[0].mxu0
      %v916 = vadd.f32 %v845, %v915
      %917 = vdwg.mxu0
      %v918 = vadd.f32 %v195, %v772
      %v919 = vadd.f32 %v197, %v774
      %v920 = vadd.f32 %v266, %v914
      %v921 = vadd.f32 %v268, %v916
      %vm922 = vcmask 1041408
      %v923 = vsel %vm922, %v918, 0.0
      %v924 = vsel %vm922, %v919, 0.0
      %v925 = vadd.f32 %v923, %v924
      %v926 = vsel %vm922, %v920, 0.0
      %v927 = vadd.f32 %v925, %v926
      %v928 = vsel %vm922, %v921, 0.0
      %v929 = vadd.f32 %v927, %v928
      %930 = vadd.xlane.f32.xlu0 %v929
      %v931 = vpop.xlane.xlu0 %930
      %v932 = vrcp.pop 512.0
      %v933 = vmul.f32 %v931, %v932
      %v934 = vsub.f32 %v918, %v933
      %v935 = vsub.f32 %v919, %v933
      %v936 = vsub.f32 %v920, %v933
      %v937 = vsub.f32 %v921, %v933
      %v938 = vmul.f32 %v934, %v934
      %v939 = vmul.f32 %v935, %v935
      %v940 = vmul.f32 %v936, %v936
      %v941 = vmul.f32 %v937, %v937
      %v942 = vsel %vm922, %v938, 0.0
      %v943 = vsel %vm922, %v939, 0.0
      %v944 = vadd.f32 %v942, %v943
      %v945 = vsel %vm922, %v940, 0.0
      %v946 = vadd.f32 %v944, %v945
      %v947 = vsel %vm922, %v941, 0.0
      %v948 = vadd.f32 %v946, %v947
      %949 = vadd.xlane.f32.xlu0 %v948
      %v950 = vpop.xlane.xlu0 %949
      %v951 = vmul.f32 %v950, %v932
      %v952 = vadd.f32 %v951, 1e-05
      %v953 = vrsqrt.pop %v952
      %v954 = vmul.f32 %v934, %v953
      %v955 = vmul.f32 %v935, %v953
      %v956 = vmul.f32 %v936, %v953
      %v957 = vmul.f32 %v937, %v953
      %v958 = vld [vmem:[%s4] sm:$0xf]
      %v960 = vlaneseq
      %v961 = vshrl.u32 %v960, 7
      %v962 = vsub.s32 0, %v961
      %v963 = vrot.slane %v958, %v962
      %v964 = vlaneseq
      %v965 = vshrl.u32 %v964, 7
      %v966 = vsub.s32 1, %v965
      %v967 = vrot.slane %v958, %v966
      %v968 = vlaneseq
      %v969 = vshrl.u32 %v968, 7
      %v970 = vsub.s32 2, %v969
      %v971 = vrot.slane %v958, %v970
      %v972 = vlaneseq
      %v973 = vshrl.u32 %v972, 7
      %v974 = vsub.s32 3, %v973
      %v975 = vrot.slane %v958, %v974
      %v980 = vmul.f32 %v954, %v963
      %v981 = vmul.f32 %v955, %v967
      %v982 = vmul.f32 %v956, %v971
      %v983 = vmul.f32 %v957, %v975
      %v984 = vld [vmem:[%s5] sm:$0xf]
      %v986 = vlaneseq
      %v987 = vshrl.u32 %v986, 7
      %v988 = vsub.s32 0, %v987
      %v989 = vrot.slane %v984, %v988
      %v990 = vlaneseq
      %v991 = vshrl.u32 %v990, 7
      %v992 = vsub.s32 1, %v991
      %v993 = vrot.slane %v984, %v992
      %v994 = vlaneseq
      %v995 = vshrl.u32 %v994, 7
      %v996 = vsub.s32 2, %v995
      %v997 = vrot.slane %v984, %v996
      %v998 = vlaneseq
      %v999 = vshrl.u32 %v998, 7
      %v1000 = vsub.s32 3, %v999
      %v1001 = vrot.slane %v984, %v1000
      %v1006 = vadd.f32 %v980, %v989
      %v1007 = vadd.f32 %v981, %v993
      %v1008 = vadd.f32 %v982, %v997
      %v1009 = vadd.f32 %v983, %v1001
      %v1014 = vcombine.low %v1006, %v1007
      %v1015 = vcombine.low %v1008, %v1009
      %v1017 = vunpack.c.l.s4 1983009808
      %v1018 = vunpack.c.0.s8 %v1017
      %v1019 = vlaneseq
      %v1020 = vshrl.u32 %v1019, 7
      %v1021 = vsub.s32 %v1018, %v1020
      %v1022 = vrot.slane %v1014, %v1021
      %v1024 = vunpack.c.l.s4 1983009808
      %v1025 = vunpack.c.0.s8 %v1024
      %v1026 = vlaneseq
      %v1027 = vshrl.u32 %v1026, 7
      %v1028 = vsub.s32 %v1025, %v1027
      %v1029 = vrot.slane %v1015, %v1028
      %v1030 = vcombine.low %v1022, %v1029
      %1032 = vst [vmem:[#allocation9] sm:$0xff] %v1030
    $region45: #{tpu_custom_call.1} parent=1 // pred_fallthru
      _
    // Predicated region
    $region46: #{tpu_custom_call.1} parent=1 // pred_check
      _
    $region47: #{tpu_custom_call.1} parent=1 // pred_check_branch
      %1034 = sbr.rel (0) target = $region49
    $region48: #{tpu_custom_call.1} parent=1 // pred_region
      %s1036 = ssub.s32 128, 128
      %1037 = vsyncadd [#allocation5], %s1036
      %s1039 = sshll.u32 [#allocation9], 4
      %s1040 = int_to_ptr.vmem [resolvable:$true] %s1039
      %1042 = dma.vmem_to_hbm [thread:$0]  %s1040, 128, %s6, [#allocation5]
    $region49: #{tpu_custom_call.1} parent=1 // pred_fallthru
      _
    // Predicated region
    $region50: #{tpu_custom_call.1} parent=1 // pred_check
      _
    $region51: #{tpu_custom_call.1} parent=1 // pred_check_branch
      %1044 = sbr.rel (0) target = $region53
    $region52: #{tpu_custom_call.1} parent=1 // pred_region
      %1045 = dma.done [#allocation5], 128
    $region53: #{tpu_custom_call.1} parent=1 // pred_fallthru
      _
    %1046 = vsyncpa [#allocation4], 1
    %1047 = vsyncpa [#allocation7], 1
    %1048 = vsyncpa [#allocation5], 1

</llo_original>
